<compile_context>
chip_gen: v5e
topology: v5e:2x2
jax: 0.10.0
libtpu: 0.0.40
codegen_flags: <defaults>
</compile_context>

<pallas_src>
import functools

import jax
import jax.numpy as jnp
import numpy as np
from jax.experimental import pallas as pl
from jax.experimental.pallas import tpu as pltpu


# ----------------------------- K/V projection --------------------------------
def kv_project_kernel(medT_ref, wkvT_ref, kT_ref, vT_ref, *, inner):
    """Per batch element: kv = WkvT (2*inner, D) @ media^T (D, TM)."""
    medT = medT_ref[0]                                           # (D, TM) bf16
    kv = jnp.dot(wkvT_ref[...], medT,
                 preferred_element_type=jnp.float32)             # (2*inner, TM)
    kT_ref[0] = kv[:inner, :].astype(kT_ref.dtype)               # K^T rows
    vT_ref[0] = kv[inner:, :].astype(vT_ref.dtype)               # V^T rows


# ----------------------------- masked attention ------------------------------
def masked_cross_attn_kernel(x_ref, tt_ref, kT_ref, vT_ref,
                             gamma_ref, beta_ref, wq_ref, wo_ref,
                             o_ref, *, heads, dim_head, m_per_t, eps):
    """Grid = (batch, query-tile); both axes parallel (no cross-step state)."""
    # ---- LayerNorm(dim) in f32 (biased variance, eps=1e-5) ------------------
    x = x_ref[0].astype(jnp.float32)                             # (tq, D)
    mean = jnp.mean(x, axis=-1, keepdims=True)
    var = jnp.mean(jnp.square(x - mean), axis=-1, keepdims=True)
    xn = (x - mean) * jax.lax.rsqrt(var + eps)
    xn = xn * gamma_ref[...] + beta_ref[...]
    xn = xn.astype(wq_ref.dtype)                                 # bf16 MXU operand

    # ---- Q projection: single lane-dense matmul (scale folded into Wq) ------
    q2 = jnp.dot(xn, wq_ref[...],
                 preferred_element_type=jnp.float32)             # (tq, inner) f32
    q2 = q2.astype(kT_ref.dtype)
    # one static head split: dim_head lane slices -> leading head axis
    q = jnp.stack([q2[:, h * dim_head:(h + 1) * dim_head] for h in range(heads)],
                  axis=0)                                        # (H, tq, dh)

    kT = kT_ref[0]                                               # (H, dh, TM)
    vT = vT_ref[0]                                               # (H, dh, TM)
    tm = kT.shape[-1]

    # ---- masked softmax(Q K^T) V, head-batched -------------------------------
    sim = jnp.einsum('hne,hek->hnk', q, kT,
                     preferred_element_type=jnp.float32)         # (H, tq, TM) f32

    tt = tt_ref[0]                                               # (tq, 1) int32
    media_time = jax.lax.broadcasted_iota(jnp.int32, (1, tm), 1) // m_per_t + 1
    attend = (tt == media_time)                                  # (tq, TM)
    no_media = (tt == 0)                                         # (tq, 1)

    sim = jnp.where(attend[None], sim, -1e30)                    # finite sentinel
    sim = sim - jnp.max(sim, axis=-1, keepdims=True)
    e = jnp.exp(sim)
    denom = jnp.sum(e, axis=-1, keepdims=True)
    attn = e * pl.reciprocal(denom, approx=True)
    attn = jnp.where(no_media[None], 0.0, attn)                  # (H, tq, TM)

    out_h = jnp.einsum('hnk,hek->hne', attn.astype(vT.dtype), vT,
                       preferred_element_type=jnp.float32)       # (H, tq, dh) f32
    out_h = out_h.astype(wo_ref.dtype)

    # ---- heads -> lanes, single lane-dense output projection -----------------
    out_flat = jnp.concatenate([out_h[h] for h in range(heads)], axis=-1)  # (tq, inner)
    o = jnp.dot(out_flat, wo_ref[...], preferred_element_type=jnp.float32)
    o_ref[0] = o.astype(o_ref.dtype)


def _pick_q_tile(n, cap=256):
    # Cap at 256: safe on v7x (64 MiB VMEM), no MXU-utilization loss on v5e/v6e
    # once the projections are lane-dense.
    for cand in (cap, 128, 64, 32, 16, 8):
        if cand <= n and n % cand == 0:
            return cand
    return n


def masked_cross_attention(x, media, media_locations, params, *, heads, dim_head):
    B, N, D = x.shape
    _, T, M, _ = media.shape
    TM = T * M
    inner = heads * dim_head
    scale = dim_head ** -0.5
    cdt = jnp.bfloat16                 # MXU operand dtype (f32 accumulation)
    out_dtype = x.dtype

    # ---- glue kept in plain JAX: cumsum + weight / layout prep ---------------
    text_time = jnp.cumsum(media_locations.astype(jnp.int32), axis=-1).reshape(B, N, 1)
    medT = media.reshape(B, TM, D).astype(cdt).transpose(0, 2, 1)        # (B, D, TM)

    gamma = params["gamma"].reshape(1, D).astype(jnp.float32)
    beta = params["beta"].reshape(1, D).astype(jnp.float32)
    wq = (params["wq"].astype(jnp.float32) * scale).astype(cdt)          # (D, inner)
    wo = params["wo"].astype(cdt)                                        # (inner, D)
    wkvT = jnp.concatenate([params["wk"].T, params["wv"].T], axis=0).astype(cdt)  # (2*inner, D)

    # ---- K/V projection kernel (grid over batch) -----------------------------
    kT, vT = pl.pallas_call(
        functools.partial(kv_project_kernel, inner=inner),
        out_shape=(jax.ShapeDtypeStruct((B, inner, TM), cdt),
                   jax.ShapeDtypeStruct((B, inner, TM), cdt)),
        grid=(B,),
        in_specs=[
            pl.BlockSpec((1, D, TM), lambda b: (b, 0, 0)),               # media^T
            pl.BlockSpec(memory_space=pltpu.MemorySpace.VMEM),           # WkvT
        ],
        out_specs=(pl.BlockSpec((1, inner, TM), lambda b: (b, 0, 0)),
                   pl.BlockSpec((1, inner, TM), lambda b: (b, 0, 0))),
        compiler_params=pltpu.CompilerParams(
            dimension_semantics=("parallel",)),
    )(medT, wkvT)
    # row-major (B, inner, TM) == (B, H, dh, TM): metadata-only reshape.
    kT = kT.reshape(B, heads, dim_head, TM)
    vT = vT.reshape(B, heads, dim_head, TM)

    tq = _pick_q_tile(N)
    nq = N // tq

    # ---- VMEM footprint estimate -> explicit scoped limit --------------------
    def nbytes(n_elem, dt):
        return int(n_elem) * jnp.dtype(dt).itemsize
    blocks = (2 * nbytes(tq * D, x.dtype)           # x tile (double-buffered)
              + 2 * nbytes(tq, jnp.int32)           # text_time tile
              + 2 * 2 * nbytes(inner * TM, cdt)     # K^T, V^T blocks
              + 2 * nbytes(tq * D, out_dtype))      # output tile
    consts = 2 * nbytes(D, jnp.float32) + 2 * nbytes(D * inner, cdt)
    interm = nbytes(3 * heads * tq * TM             # sim / exp / attn
                    + 3 * tq * inner                # q2 / q / out_flat
                    + heads * tq * dim_head         # out_h
                    + 2 * tq * D, jnp.float32)      # LN temporaries
    vmem_limit = int(min(100 * 2 ** 20, max(16 * 2 ** 20, 2 * (blocks + consts + interm))))

    kernel = functools.partial(
        masked_cross_attn_kernel,
        heads=heads, dim_head=dim_head, m_per_t=M, eps=1e-5)

    def vmem():
        return pl.BlockSpec(memory_space=pltpu.MemorySpace.VMEM)

    return pl.pallas_call(
        kernel,
        out_shape=jax.ShapeDtypeStruct((B, N, D), out_dtype),
        grid=(B, nq),
        in_specs=[
            pl.BlockSpec((1, tq, D), lambda b, j: (b, j, 0)),                     # x tile
            pl.BlockSpec((1, tq, 1), lambda b, j: (b, j, 0)),                     # text_time
            pl.BlockSpec((1, heads, dim_head, TM), lambda b, j: (b, 0, 0, 0)),    # K^T
            pl.BlockSpec((1, heads, dim_head, TM), lambda b, j: (b, 0, 0, 0)),    # V^T
            vmem(), vmem(),                                                        # gamma, beta
            vmem(), vmem(),                                                        # Wq, Wo
        ],
        out_specs=pl.BlockSpec((1, tq, D), lambda b, j: (b, j, 0)),
        compiler_params=pltpu.CompilerParams(
            dimension_semantics=("parallel", "parallel"),
            vmem_limit_bytes=vmem_limit,
        ),
    )(x, text_time, kT, vT, gamma, beta, wq, wo)


def ref_forward(x, media, media_locations, params, *, heads, dim_head):
    """Pure-JAX f32 reference matching the PyTorch module."""
    B, N, D = x.shape
    _, T, M, _ = media.shape
    scale = dim_head ** (-0.5)
    mean = jnp.mean(x, -1, keepdims=True)
    var = jnp.mean((x - mean) ** 2, -1, keepdims=True)
    xn = (x - mean) / jnp.sqrt(var + 1e-5) * params["gamma"] + params["beta"]
    q = xn @ params["wq"]
    med = media.reshape(B, T * M, D)
    k = med @ params["wk"]
    v = med @ params["wv"]

    def split(z):
        return z.reshape(B, -1, heads, dim_head).transpose(0, 2, 1, 3)

    q, k, v = split(q) * scale, split(k), split(v)
    sim = jnp.einsum("bhid,bhjd->bhij", q, k)
    text_time = jnp.cumsum(media_locations.astype(jnp.int32), -1)        # (B, N)
    media_time = jnp.repeat(jnp.arange(T) + 1, M)                        # (T*M,)
    mask = text_time[:, None, :, None] == media_time[None, None, None, :]
    sim = jnp.where(mask, sim, -jnp.finfo(sim.dtype).max)
    sim = sim - jnp.max(sim, -1, keepdims=True)
    attn = jax.nn.softmax(sim, -1)
    attn = jnp.where((text_time == 0)[:, None, :, None], 0.0, attn)
    out = jnp.einsum("bhij,bhjd->bhid", attn, v)
    out = out.transpose(0, 2, 1, 3).reshape(B, N, heads * dim_head)
    return out @ params["wo"]


if __name__ == "__main__":
    B, N, D = 2, 8, 32
    T, M = 2, 4
    heads, dim_head = 4, 16
    inner = heads * dim_head

    key = jax.random.PRNGKey(0)
    kx, km, kloc, kq, kk, kv, ko = jax.random.split(key, 7)

    x = jax.random.normal(kx, (B, N, D), jnp.float32)
    media = jax.random.normal(km, (B, T, M, D), jnp.float32)
    media_locations = jax.random.bernoulli(kloc, 0.3, (B, N))

    params = {
        "gamma": jnp.ones((D,), jnp.float32),
        "beta": jnp.zeros((D,), jnp.float32),
        "wq": jax.random.normal(kq, (D, inner), jnp.float32) * 0.05,
        "wk": jax.random.normal(kk, (D, inner), jnp.float32) * 0.05,
        "wv": jax.random.normal(kv, (D, inner), jnp.float32) * 0.05,
        "wo": jax.random.normal(ko, (inner, D), jnp.float32) * 0.05,
    }

    out = masked_cross_attention(x, media, media_locations, params,
                                 heads=heads, dim_head=dim_head)
    out = jax.block_until_ready(out)

    ref = ref_forward(x, media, media_locations, params,
                      heads=heads, dim_head=dim_head)
    # bf16 MXU operands with f32 accumulation -> loose-but-tight-enough tolerance.
    np.testing.assert_allclose(np.asarray(out, dtype=np.float32),
                               np.asarray(ref), rtol=3e-2, atol=3e-2)

    print("KERNEL_OK")
</pallas_src>

<mosaic_0001>
module attributes {stable_mosaic.version = 11 : i64} {
  func.func @kv_project_kernel(%arg0: i32, %arg1: memref<1x32x8xbf16, #tpu.memory_space<vmem>>, %arg2: memref<128x32xbf16, #tpu.memory_space<vmem>>, %arg3: memref<1x64x8xbf16, #tpu.memory_space<vmem>>, %arg4: memref<1x64x8xbf16, #tpu.memory_space<vmem>>) attributes {dimension_semantics = [#tpu.dimension_semantics<parallel>], iteration_bounds = array<i64: 2>, scalar_prefetch = 0 : i64, scratch_operands = 0 : i64, tpu.core_type = #tpu.core_type<tc>, window_params = [{transform_indices = @transform_0, window_bounds = array<i64: 1, 32, 8>}, {pipeline_mode = #tpu.pipeline_mode<synchronous>, transform_indices = @transform_1, window_bounds = array<i64: 128, 32>}, {transform_indices = @transform_2, window_bounds = array<i64: 1, 64, 8>}, {transform_indices = @transform_3, window_bounds = array<i64: 1, 64, 8>}]} {
    %c0 = arith.constant 0 : index
    %c0_0 = arith.constant 0 : index
    %c0_1 = arith.constant 0 : index
    %0 = vector.load %arg1[%c0, %c0_0, %c0_1] : memref<1x32x8xbf16, #tpu.memory_space<vmem>>, vector<1x32x8xbf16>
    %1 = vector.shape_cast %0 : vector<1x32x8xbf16> to vector<32x8xbf16>
    %c0_2 = arith.constant 0 : index
    %c0_3 = arith.constant 0 : index
    %2 = vector.load %arg2[%c0_2, %c0_3] : memref<128x32xbf16, #tpu.memory_space<vmem>>, vector<128x32xbf16>
    %cst = arith.constant dense<0.000000e+00> : vector<128x8xf32>
    %3 = tpu.matmul %2, %1, %cst {dimension_numbers = #tpu.dot_dimension_numbers<[1], [0], [0], [1], [0, 0, 1, 1], [], []>} : vector<128x32xbf16>, vector<32x8xbf16>, vector<128x8xf32> -> vector<128x8xf32>
    %4 = vector.extract_strided_slice %3 {offsets = [0, 0], sizes = [64, 8], strides = [1, 1]} : vector<128x8xf32> to vector<64x8xf32>
    %5 = arith.truncf %4 : vector<64x8xf32> to vector<64x8xbf16>
    %c0_4 = arith.constant 0 : index
    %c0_5 = arith.constant 0 : index
    %c0_6 = arith.constant 0 : index
    %6 = vector.load %arg3[%c0_4, %c0_5, %c0_6] : memref<1x64x8xbf16, #tpu.memory_space<vmem>>, vector<1x64x8xbf16>
    %7 = vector.shape_cast %6 : vector<1x64x8xbf16> to vector<64x8xbf16>
    %8 = vector.shape_cast %5 : vector<64x8xbf16> to vector<1x64x8xbf16>
    tpu.vector_store %arg3[%c0_4, %c0_5, %c0_6], %8 {strides = array<i32>} : memref<1x64x8xbf16, #tpu.memory_space<vmem>>, vector<1x64x8xbf16>,
    %9 = vector.extract_strided_slice %3 {offsets = [64, 0], sizes = [64, 8], strides = [1, 1]} : vector<128x8xf32> to vector<64x8xf32>
    %10 = arith.truncf %9 : vector<64x8xf32> to vector<64x8xbf16>
    %c0_7 = arith.constant 0 : index
    %c0_8 = arith.constant 0 : index
    %c0_9 = arith.constant 0 : index
    %11 = vector.load %arg4[%c0_7, %c0_8, %c0_9] : memref<1x64x8xbf16, #tpu.memory_space<vmem>>, vector<1x64x8xbf16>
    %12 = vector.shape_cast %11 : vector<1x64x8xbf16> to vector<64x8xbf16>
    %13 = vector.shape_cast %10 : vector<64x8xbf16> to vector<1x64x8xbf16>
    tpu.vector_store %arg4[%c0_7, %c0_8, %c0_9], %13 {strides = array<i32>} : memref<1x64x8xbf16, #tpu.memory_space<vmem>>, vector<1x64x8xbf16>,
    return
  }
  func.func @transform_0(%arg0: i32) -> (i32, i32, i32) {
    %c0_i32 = arith.constant 0 : i32
    %c0_i32_0 = arith.constant 0 : i32
    %c0_i32_1 = arith.constant 0 : i32
    return %arg0, %c0_i32, %c0_i32_0 : i32, i32, i32
  }
  func.func @transform_1(%arg0: i32) -> (i32, i32) {
    %c0_i32 = arith.constant 0 : i32
    %c0_i32_0 = arith.constant 0 : i32
    %c0_i32_1 = arith.constant 0 : i32
    return %c0_i32, %c0_i32_0 : i32, i32
  }
  func.func @transform_2(%arg0: i32) -> (i32, i32, i32) {
    %c0_i32 = arith.constant 0 : i32
    %c0_i32_0 = arith.constant 0 : i32
    %c0_i32_1 = arith.constant 0 : i32
    return %arg0, %c0_i32, %c0_i32_0 : i32, i32, i32
  }
  func.func @transform_3(%arg0: i32) -> (i32, i32, i32) {
    %c0_i32 = arith.constant 0 : i32
    %c0_i32_0 = arith.constant 0 : i32
    %c0_i32_1 = arith.constant 0 : i32
    return %arg0, %c0_i32, %c0_i32_0 : i32, i32, i32
  }
}

</mosaic_0001>

<llo_original>
// kernel: tpu_custom_call.1
$region0: #{tpu_custom_call.1}
  #allocation0 [shape = 'u32[]', space=smem, size = 0x4, offset = 0x4, fixed_abs, tag = 'smem constant byte address 0x4 - core index']
  #allocation1 [shape = 'u32[72,128]{1,0:T(1,128)}', space=vmem, size = 0x9000, scoped, tag = 'internal scratch']
  %s0 = inlined_call_operand.vmem [shape: bf16[2,32,8], index: 0, kind: input, shape index: {}]
  %s1 = inlined_call_operand.vmem [shape: bf16[128,32], index: 1, kind: input, shape index: {}]
  %s2 = inlined_call_operand.vmem [shape: bf16[2,64,8], index: 2, kind: output, shape index: {0}]
  %s3 = inlined_call_operand.vmem [shape: bf16[2,64,8], index: 3, kind: output, shape index: {1}]
  %4 = xla_tuple %s2, %s3
  %s5 = sld [smem:[#allocation0]]
  $region49: #{tpu_custom_call.1} parent=0
    _
  %s7 = ssub.s32 1, %s5
  %s8 = scalar_select 0, %s7, %s5
  loop: start=0, step=1, limit=4
  $region2: #{tpu_custom_call.1} parent=0 // loop_pre_header
    _
  $region3: #{tpu_custom_call.1} parent=0 // loop_header
    %s10 = sphi 0, %s14
    %p11 = scmp.ge.s32.totalorder %s10, 4
    %s20 = sphi 0, %s22
    %s23 = sphi 0, %s20
    %s24 = sphi 0, %s23
    %s40 = sphi 0, %s24
    %s44 = sphi 0, %s44
    %s46 = sphi 0, %s44
    %s47 = sphi 0, %s46
    %s61 = sphi 0, %s47
    %s67 = sphi 0, %s69
    %s70 = sphi 0, %s67
    %s71 = sphi 0, %s70
    %s87 = sphi 0, %s71
    %s93 = sphi 0, %s95
    %s96 = sphi 0, %s93
    %s97 = sphi 0, %s96
    %s113 = sphi 0, %s97
  $region4: #{tpu_custom_call.1} parent=0 // loop_header_branch
    %13 = sbr.rel (%p11) target = $region8
  $region5: #{tpu_custom_call.1} parent=0 // loop_body
    %s15 = ssub.s32 %s10, 1
    %s16 = ssub.s32 %s10, 2
    %s17 = sadd.s32 %s10, 1
    %s18 = ssub.s32 %s10, %s17
    %p19 = scmp.eq.s32.totalorder %s18, 0
    %s21 = sadd.s32 %s20, 1
    %s22 = scalar_select %p19, %s20, %s21
    %p25 = pneg %p19
    %p26 = scmp.eq.s32.totalorder %s10, 1
    %p27 = por %p25, %p26
    %p28 = scmp.ne.s32.totalorder %s20, %s23
    %p29 = scmp.eq.s32.totalorder %s10, 0
    %p30 = por %p28, %p29
    %p31 = scmp.ne.s32.totalorder %s20, %s23
    %p32 = scmp.eq.s32.totalorder %s15, 1
    %p33 = por %p31, %p32
    %p34 = scmp.ne.s32.totalorder %s23, %s24
    %p35 = scmp.eq.s32.totalorder %s15, 0
    %p36 = por %p34, %p35
    %p37 = scmp.ne.s32.totalorder %s23, %s24
    %p38 = scmp.eq.s32.totalorder %s16, 1
    %p39 = por %p37, %p38
    %p41 = scmp.ne.s32.totalorder %s24, %s40
    %p42 = scmp.eq.s32.totalorder %s16, 0
    %p43 = por %p41, %p42
    %s45 = sadd.s32 %s44, 1
    %p48 = scmp.eq.s32.totalorder %s10, 1
    %p49 = scmp.ne.s32.totalorder %s44, %s46
    %p50 = scmp.eq.s32.totalorder %s10, 0
    %p51 = por %p49, %p50
    %p52 = scmp.ne.s32.totalorder %s44, %s46
    %p53 = scmp.eq.s32.totalorder %s15, 1
    %p54 = por %p52, %p53
    %p55 = scmp.ne.s32.totalorder %s46, %s47
    %p56 = scmp.eq.s32.totalorder %s15, 0
    %p57 = por %p55, %p56
    %p58 = scmp.ne.s32.totalorder %s46, %s47
    %p59 = scmp.eq.s32.totalorder %s16, 1
    %p60 = por %p58, %p59
    %p62 = scmp.ne.s32.totalorder %s47, %s61
    %p63 = scmp.eq.s32.totalorder %s16, 0
    %p64 = por %p62, %p63
    %s65 = ssub.s32 %s10, %s17
    %p66 = scmp.eq.s32.totalorder %s65, 0
    %s68 = sadd.s32 %s67, 1
    %s69 = scalar_select %p66, %s67, %s68
    %p72 = pneg %p66
    %p73 = scmp.eq.s32.totalorder %s10, 1
    %p74 = por %p72, %p73
    %p75 = scmp.ne.s32.totalorder %s67, %s70
    %p76 = scmp.eq.s32.totalorder %s10, 0
    %p77 = por %p75, %p76
    %p78 = scmp.ne.s32.totalorder %s67, %s70
    %p79 = scmp.eq.s32.totalorder %s15, 1
    %p80 = por %p78, %p79
    %p81 = scmp.ne.s32.totalorder %s70, %s71
    %p82 = scmp.eq.s32.totalorder %s15, 0
    %p83 = por %p81, %p82
    %p84 = scmp.ne.s32.totalorder %s70, %s71
    %p85 = scmp.eq.s32.totalorder %s16, 1
    %p86 = por %p84, %p85
    %p88 = scmp.ne.s32.totalorder %s71, %s87
    %p89 = scmp.eq.s32.totalorder %s16, 0
    %p90 = por %p88, %p89
    %s91 = ssub.s32 %s10, %s17
    %p92 = scmp.eq.s32.totalorder %s91, 0
    %s94 = sadd.s32 %s93, 1
    %s95 = scalar_select %p92, %s93, %s94
    %p98 = pneg %p92
    %p99 = scmp.eq.s32.totalorder %s10, 1
    %p100 = por %p98, %p99
    %p101 = scmp.ne.s32.totalorder %s93, %s96
    %p102 = scmp.eq.s32.totalorder %s10, 0
    %p103 = por %p101, %p102
    %p104 = scmp.ne.s32.totalorder %s93, %s96
    %p105 = scmp.eq.s32.totalorder %s15, 1
    %p106 = por %p104, %p105
    %p107 = scmp.ne.s32.totalorder %s96, %s97
    %p108 = scmp.eq.s32.totalorder %s15, 0
    %p109 = por %p107, %p108
    %p110 = scmp.ne.s32.totalorder %s96, %s97
    %p111 = scmp.eq.s32.totalorder %s16, 1
    %p112 = por %p110, %p111
    %p114 = scmp.ne.s32.totalorder %s97, %s113
    %p115 = scmp.eq.s32.totalorder %s16, 0
    %p116 = por %p114, %p115
    %p117 = scmp.le.s32.totalorder 1, %s10
    %p118 = scmp.lt.s32.totalorder %s10, 3
    %p119 = pnand %p117, %p118
    %p120 = pneg %p119
    // Predicated region
    $region9: #{tpu_custom_call.1} parent=5 // pred_check
      _
    $region10: #{tpu_custom_call.1} parent=5 // pred_check_branch
      %122 = sbr.rel (%p119) target = $region12
    $region11: #{tpu_custom_call.1} parent=5 // pred_region
      %s123 = ssub.s32 %s10, 1
      // Predicated region
      $region13: #{tpu_custom_call.1} parent=11 // pred_check
        %p124 = pneg %p57
      $region14: #{tpu_custom_call.1} parent=11 // pred_check_branch
        %126 = sbr.rel (%p124) target = $region16
      $region15: #{tpu_custom_call.1} parent=11 // pred_region
        _
      $region16: #{tpu_custom_call.1} parent=11 // pred_fallthru
        _
    $region12: #{tpu_custom_call.1} parent=5 // pred_fallthru
      _
    %p127 = scmp.lt.s32.totalorder %s10, 2
    // Predicated region
    $region17: #{tpu_custom_call.1} parent=5 // pred_check
      %p128 = pneg %p127
    $region18: #{tpu_custom_call.1} parent=5 // pred_check_branch
      %130 = sbr.rel (%p128) target = $region20
    $region19: #{tpu_custom_call.1} parent=5 // pred_region
      // Predicated region
      $region21: #{tpu_custom_call.1} parent=19 // pred_check
        %p131 = pneg %p30
      $region22: #{tpu_custom_call.1} parent=19 // pred_check_branch
        %133 = sbr.rel (%p131) target = $region24
      $region23: #{tpu_custom_call.1} parent=19 // pred_region
        %p134 = scmp.lt.s32.totalorder %s10, 1
        %s135 = scalar_select %p134, %s10, 1
        %s136 = smul.addr %s135, 4
        %s137 = smul.addr %s136, 4
        %s138 = scalar_lea.vmem %s0, %s137
      $region24: #{tpu_custom_call.1} parent=19 // pred_fallthru
        _
    $region20: #{tpu_custom_call.1} parent=5 // pred_fallthru
      _
    %p139 = scmp.le.s32.totalorder 1, %s10
    %p140 = scmp.lt.s32.totalorder %s10, 3
    %p141 = pnand %p139, %p140
    %p142 = pneg %p141
    // Predicated region
    $region25: #{tpu_custom_call.1} parent=5 // pred_check
      _
    $region26: #{tpu_custom_call.1} parent=5 // pred_check_branch
      %144 = sbr.rel (%p141) target = $region28
    $region27: #{tpu_custom_call.1} parent=5 // pred_region
      %s145 = ssub.s32 %s10, 1
      %p146 = scmp.lt.s32.totalorder %s15, 1
      %s147 = scalar_select %p146, %s15, 1
      %s148 = smul.addr %s147, 4
      %s149 = smul.addr %s148, 4
      %s150 = scalar_lea.vmem %s0, %s149
      %p151 = pneg %p36
      %p152 = pneg %p33
      %p153 = pneg %p57
      %p154 = pneg %p54
      %p155 = pneg %p83
      %p156 = pneg %p80
      %p157 = scmp.lt.s32.totalorder %s15, 1
      %s158 = scalar_select %p157, %s15, 1
      %s159 = smul.addr %s158, 8
      %s160 = smul.addr %s159, 4
      %s161 = scalar_lea.vmem %s2, %s160
      %p162 = pneg %p109
      %p163 = pneg %p106
      %p164 = scmp.lt.s32.totalorder %s15, 1
      %s165 = scalar_select %p164, %s15, 1
      %s166 = smul.addr %s165, 8
      %s167 = smul.addr %s166, 4
      %s168 = scalar_lea.vmem %s3, %s167
      %p169 = scmp.lt.s32.totalorder %s15, 1
      %s170 = scalar_select %p169, %s15, 1
      %s171 = smul.addr %s170, 4
      %s172 = smul.addr %s171, 4
      %s173 = scalar_lea.vmem %s0, %s172
      %p174 = scmp.lt.s32.totalorder %s15, 1
      %s175 = scalar_select %p174, %s15, 1
      %s176 = smul.addr %s175, 8
      %s177 = smul.addr %s176, 4
      %s178 = scalar_lea.vmem %s2, %s177
      %p179 = scmp.lt.s32.totalorder %s15, 1
      %s180 = scalar_select %p179, %s15, 1
      %s181 = smul.addr %s180, 8
      %s182 = smul.addr %s181, 4
      %s183 = scalar_lea.vmem %s3, %s182
      %v185 = vld [vmem:[%s173] sm:$0xf]
      %v186 = vld [vmem:[%s173 + $0x4] sm:$0xf]
      %v187 = vld [vmem:[%s173 + $0x8] sm:$0xf]
      %v188 = vld [vmem:[%s173 + $0xc] sm:$0xf]
      %v189 = vld [vmem:[%s1] sm:$0xf]
      %v190 = vld [vmem:[%s1 + $0x4] sm:$0xf]
      %v191 = vld [vmem:[%s1 + $0x8] sm:$0xf]
      %v192 = vld [vmem:[%s1 + $0xc] sm:$0xf]
      %v193 = vld [vmem:[%s1 + $0x10] sm:$0xf]
      %v194 = vld [vmem:[%s1 + $0x14] sm:$0xf]
      %v195 = vld [vmem:[%s1 + $0x18] sm:$0xf]
      %v196 = vld [vmem:[%s1 + $0x1c] sm:$0xf]
      %v197 = vld [vmem:[%s1 + $0x20] sm:$0xf]
      %v198 = vld [vmem:[%s1 + $0x24] sm:$0xf]
      %v199 = vld [vmem:[%s1 + $0x28] sm:$0xf]
      %v200 = vld [vmem:[%s1 + $0x2c] sm:$0xf]
      %v201 = vld [vmem:[%s1 + $0x30] sm:$0xf]
      %v202 = vld [vmem:[%s1 + $0x34] sm:$0xf]
      %v203 = vld [vmem:[%s1 + $0x38] sm:$0xf]
      %v204 = vld [vmem:[%s1 + $0x3c] sm:$0xf]
      %v221 = vunpack.c.l.b16 %v189
      %v222 = vunpack.c.l.b16 %v190
      %v223 = vunpack.c.l.b16 %v191
      %v224 = vunpack.c.l.b16 %v192
      %v225 = vunpack.c.l.b16 %v193
      %v226 = vunpack.c.l.b16 %v194
      %v227 = vunpack.c.l.b16 %v195
      %v228 = vunpack.c.l.b16 %v196
      %v229 = vunpack.c.l.b16 %v197
      %v230 = vunpack.c.l.b16 %v198
      %v231 = vunpack.c.l.b16 %v199
      %v232 = vunpack.c.l.b16 %v200
      %v233 = vunpack.c.l.b16 %v201
      %v234 = vunpack.c.l.b16 %v202
      %v235 = vunpack.c.l.b16 %v203
      %v236 = vunpack.c.l.b16 %v204
      %v237 = vpack.c.b16 %v222, %v221
      %v238 = vpack.c.b16 %v224, %v223
      %v239 = vpack.c.b16 %v226, %v225
      %v240 = vpack.c.b16 %v228, %v227
      %v241 = vpack.c.b16 %v230, %v229
      %v242 = vpack.c.b16 %v232, %v231
      %v243 = vpack.c.b16 %v234, %v233
      %v244 = vpack.c.b16 %v236, %v235
      %v249 = vunpack.c.l.b16 %v185
      %v250 = vunpack.c.l.b16 %v186
      %v251 = vunpack.c.l.b16 %v187
      %v252 = vunpack.c.l.b16 %v188
      %v253 = vpack.c.b16 %v250, %v249
      %v254 = vpack.c.b16 %v252, %v251
      %vm257 = vcmask 261120
      %v259 = vsel %vm257, %v237, 0
      %v262 = vsel %vm257, %v238, 0
      %v265 = vsel %vm257, %v239, 0
      %v268 = vsel %vm257, %v240, 0
      %v271 = vsel %vm257, %v241, 0
      %v274 = vsel %vm257, %v242, 0
      %v277 = vsel %vm257, %v243, 0
      %v280 = vsel %vm257, %v244, 0
      %282 = vmatpush.bf16.msra.mxu0 0
      %283 = vmatpush.bf16.msra.mxu0 0
      %284 = vmatpush.bf16.msra.mxu0 0
      %285 = vmatpush.bf16.msra.mxu0 0
      %286 = vmatpush.bf16.msra.mxu0 0
      %287 = vmatpush.bf16.msra.mxu0 0
      %288 = vmatpush.bf16.msra.mxu0 %v254
      %289 = vmatpush.bf16.msra.mxu0 %v253
      %290 = vmatmul.bf16.gmra.mxu0 %v259
      %v291 = vpop.f32.mrf.mxu0
      %v292 = vadd.f32 0.0, %v291
      %v293 = vpop.f32.mrf.mxu0
      %v294 = vadd.f32 0.0, %v293
      %295 = vmatmul.bf16.gmra.mxu0 %v262
      %v296 = vpop.f32.mrf.mxu0
      %v297 = vadd.f32 0.0, %v296
      %v298 = vpop.f32.mrf.mxu0
      %v299 = vadd.f32 0.0, %v298
      %300 = vmatmul.bf16.gmra.mxu0 %v265
      %v301 = vpop.f32.mrf.mxu0
      %v302 = vadd.f32 0.0, %v301
      %v303 = vpop.f32.mrf.mxu0
      %v304 = vadd.f32 0.0, %v303
      %305 = vmatmul.bf16.gmra.mxu0 %v268
      %v306 = vpop.f32.mrf.mxu0
      %v307 = vadd.f32 0.0, %v306
      %v308 = vpop.f32.mrf.mxu0
      %v309 = vadd.f32 0.0, %v308
      %310 = vmatmul.bf16.gmra.mxu0 %v271
      %v311 = vpop.f32.mrf.mxu0
      %v312 = vadd.f32 0.0, %v311
      %v313 = vpop.f32.mrf.mxu0
      %v314 = vadd.f32 0.0, %v313
      %315 = vmatmul.bf16.gmra.mxu0 %v274
      %v316 = vpop.f32.mrf.mxu0
      %v317 = vadd.f32 0.0, %v316
      %v318 = vpop.f32.mrf.mxu0
      %v319 = vadd.f32 0.0, %v318
      %320 = vmatmul.bf16.gmra.mxu0 %v277
      %v321 = vpop.f32.mrf.mxu0
      %v322 = vadd.f32 0.0, %v321
      %v323 = vpop.f32.mrf.mxu0
      %v324 = vadd.f32 0.0, %v323
      %325 = vmatmul.bf16.gmra.mxu0 %v280
      %v326 = vpop.f32.mrf.mxu0
      %v327 = vadd.f32 0.0, %v326
      %v328 = vpop.f32.mrf.mxu0
      %v329 = vadd.f32 0.0, %v328
      %330 = vdwg.mxu0
      %v331 = vpack.c.bf16 %v292, %v292
      %v332 = vpack.c.bf16 %v294, %v294
      %v333 = vpack.c.bf16 %v297, %v297
      %v334 = vpack.c.bf16 %v299, %v299
      %v335 = vpack.c.bf16 %v302, %v302
      %v336 = vpack.c.bf16 %v304, %v304
      %v337 = vpack.c.bf16 %v307, %v307
      %v338 = vpack.c.bf16 %v309, %v309
      %vm339 = vcmask 60416
      %340 = vst.msk [vmem:[%s178] sm:$0xf] %vm339, %v331
      %341 = vst.msk [vmem:[%s178 + $0x4] sm:$0xf] %vm339, %v332
      %342 = vst.msk [vmem:[%s178 + $0x8] sm:$0xf] %vm339, %v333
      %343 = vst.msk [vmem:[%s178 + $0xc] sm:$0xf] %vm339, %v334
      %344 = vst.msk [vmem:[%s178 + $0x10] sm:$0xf] %vm339, %v335
      %345 = vst.msk [vmem:[%s178 + $0x14] sm:$0xf] %vm339, %v336
      %346 = vst.msk [vmem:[%s178 + $0x18] sm:$0xf] %vm339, %v337
      %347 = vst.msk [vmem:[%s178 + $0x1c] sm:$0xf] %vm339, %v338
      %v348 = vpack.c.bf16 %v312, %v312
      %v349 = vpack.c.bf16 %v314, %v314
      %v350 = vpack.c.bf16 %v317, %v317
      %v351 = vpack.c.bf16 %v319, %v319
      %v352 = vpack.c.bf16 %v322, %v322
      %v353 = vpack.c.bf16 %v324, %v324
      %v354 = vpack.c.bf16 %v327, %v327
      %v355 = vpack.c.bf16 %v329, %v329
      %356 = vst.msk [vmem:[%s183] sm:$0xf] %vm339, %v348
      %357 = vst.msk [vmem:[%s183 + $0x4] sm:$0xf] %vm339, %v349
      %358 = vst.msk [vmem:[%s183 + $0x8] sm:$0xf] %vm339, %v350
      %359 = vst.msk [vmem:[%s183 + $0xc] sm:$0xf] %vm339, %v351
      %360 = vst.msk [vmem:[%s183 + $0x10] sm:$0xf] %vm339, %v352
      %361 = vst.msk [vmem:[%s183 + $0x14] sm:$0xf] %vm339, %v353
      %362 = vst.msk [vmem:[%s183 + $0x18] sm:$0xf] %vm339, %v354
      %363 = vst.msk [vmem:[%s183 + $0x1c] sm:$0xf] %vm339, %v355
      %p364 = scmp.lt.s32.totalorder %s15, 1
      %s365 = scalar_select %p364, %s15, 1
      %s366 = smul.addr %s365, 8
      %s367 = smul.addr %s366, 4
      %s368 = scalar_lea.vmem %s2, %s367
      %p369 = scmp.lt.s32.totalorder %s15, 1
      %s370 = scalar_select %p369, %s15, 1
      %s371 = smul.addr %s370, 8
      %s372 = smul.addr %s371, 4
      %s373 = scalar_lea.vmem %s3, %s372
      // Predicated region
      $region29: #{tpu_custom_call.1} parent=27 // pred_check
        %p374 = pneg %p80
      $region30: #{tpu_custom_call.1} parent=27 // pred_check_branch
        %376 = sbr.rel (%p374) target = $region32
      $region31: #{tpu_custom_call.1} parent=27 // pred_region
        _
      $region32: #{tpu_custom_call.1} parent=27 // pred_fallthru
        _
      // Predicated region
      $region33: #{tpu_custom_call.1} parent=27 // pred_check
        %p377 = pneg %p106
      $region34: #{tpu_custom_call.1} parent=27 // pred_check_branch
        %379 = sbr.rel (%p377) target = $region36
      $region35: #{tpu_custom_call.1} parent=27 // pred_region
        _
      $region36: #{tpu_custom_call.1} parent=27 // pred_fallthru
        _
    $region28: #{tpu_custom_call.1} parent=5 // pred_fallthru
      _
    %p380 = scmp.le.s32.totalorder 2, %s10
    // Predicated region
    $region37: #{tpu_custom_call.1} parent=5 // pred_check
      %p381 = pneg %p380
    $region38: #{tpu_custom_call.1} parent=5 // pred_check_branch
      %383 = sbr.rel (%p381) target = $region40
    $region39: #{tpu_custom_call.1} parent=5 // pred_region
      %s384 = ssub.s32 %s10, 2
      // Predicated region
      $region41: #{tpu_custom_call.1} parent=39 // pred_check
        %p385 = pneg %p86
      $region42: #{tpu_custom_call.1} parent=39 // pred_check_branch
        %387 = sbr.rel (%p385) target = $region44
      $region43: #{tpu_custom_call.1} parent=39 // pred_region
        %p388 = scmp.lt.s32.totalorder %s16, 1
        %s389 = scalar_select %p388, %s16, 1
        %s390 = smul.addr %s389, 8
        %s391 = smul.addr %s390, 4
        %s392 = scalar_lea.vmem %s2, %s391
      $region44: #{tpu_custom_call.1} parent=39 // pred_fallthru
        _
      // Predicated region
      $region45: #{tpu_custom_call.1} parent=39 // pred_check
        %p393 = pneg %p112
      $region46: #{tpu_custom_call.1} parent=39 // pred_check_branch
        %395 = sbr.rel (%p393) target = $region48
      $region47: #{tpu_custom_call.1} parent=39 // pred_region
        %p396 = scmp.lt.s32.totalorder %s16, 1
        %s397 = scalar_select %p396, %s16, 1
        %s398 = smul.addr %s397, 8
        %s399 = smul.addr %s398, 4
        %s400 = scalar_lea.vmem %s3, %s399
      $region48: #{tpu_custom_call.1} parent=39 // pred_fallthru
        _
    $region40: #{tpu_custom_call.1} parent=5 // pred_fallthru
      _
  $region6: #{tpu_custom_call.1} parent=0 // loop_footer
    %s14 = sadd.s32 1, %s10
  $region7: #{tpu_custom_call.1} parent=0 // loop_footer_branch
    %9 = sbr.rel target = $region3
  $region8: #{tpu_custom_call.1} parent=0 // loop_exit
    _

</llo_original>
